<compile_context>
chip_gen: v7x
topology: tpu7x:2x2x1
jax: 0.10.0
libtpu: 0.0.40
codegen_flags: <defaults>
</compile_context>

<pallas_src>
import functools

import jax
import jax.numpy as jnp
from jax.experimental import pallas as pl
from jax.experimental.pallas import tpu as pltpu


# Below this, a fused XLA slice beats any custom call (fixed pallas_call +
# DMA-descriptor setup ~1-2 us dominates tiny copies).
_SMALL_COPY_BYTES = 256 << 10
# Only bother with multiple in-flight descriptors above this total size.
_CHUNK_THRESHOLD_BYTES = 4 << 20
# Keep every chunk at least this big so per-descriptor overhead is negligible.
_MIN_CHUNK_BYTES = 512 << 10


def _device_kind() -> str:
    try:
        return jax.devices()[0].device_kind.lower()
    except Exception:  # pragma: no cover - defensive; chunking is perf-only
        return ""


def _pick_num_chunks(copy_bytes: int, T: int) -> int:
    """How many concurrent DMA descriptors to use (all static, per review)."""
    if copy_bytes < _CHUNK_THRESHOLD_BYTES:
        return 1
    kind = _device_kind()
    if "v5" in kind:
        # ~0.8 TB/s HBM: a single contiguous DMA already saturates; extra
        # descriptors only add fixed cost.
        return 1
    target = 4 if "v6" in kind else 8  # v6e: 2-4 in flight; v7x+: ~8.
    max_by_bytes = max(1, copy_bytes // _MIN_CHUNK_BYTES)
    max_by_rows = max(1, T // 8)  # keep chunks sublane-aligned (f32: 8 rows)
    return int(max(1, min(target, max_by_bytes, max_by_rows)))


def _chunk_rows(T: int, n_chunks: int):
    """Static (start, size) row windows; all but the tail are multiples of 8."""
    if n_chunks <= 1:
        return ((0, T),)
    rows = -(-T // n_chunks)                # ceil
    rows = max(8, ((rows + 7) // 8) * 8)    # sublane-align chunk boundaries
    chunks = []
    r = 0
    while r < T:
        size = min(rows, T - r)
        chunks.append((r, size))
        r += size
    return tuple(chunks)


def _pos_embed_dma_kernel(chunks, e_hbm, o_hbm, sems):
    """Start all HBM->HBM row-chunk copies of E[:T], then wait on all of them.

    `chunks` is a static tuple of (row_start, row_count); one DMA descriptor
    (and one DMA semaphore slot) per chunk, all in flight concurrently.
    """
    copies = []
    for i, (r0, rn) in enumerate(chunks):
        cp = pltpu.make_async_copy(
            e_hbm.at[pl.ds(r0, rn), :],
            o_hbm.at[pl.ds(r0, rn), :],
            sems.at[i],
        )
        cp.start()
        copies.append(cp)
    for cp in copies:
        cp.wait()


def positional_embedding_forward(x, E, *, force_kernel=False, num_chunks=None):
    """Returns E[:T] where T = x.shape[1]  (PositionalEmbedding.forward).

    x : (B, T) integer index tensor (only its static shape is used)
    E : (n_timesteps, embed_size) float32 positional table

    force_kernel : always take the Pallas DMA path (used for testing).
    num_chunks   : override the chunked-DMA heuristic (used for testing).
    """
    _, T = x.shape
    n_timesteps, embed_size = E.shape
    assert T <= n_timesteps, "sequence length exceeds positional table size"

    itemsize = jnp.dtype(E.dtype).itemsize
    copy_bytes = T * embed_size * itemsize

    # Perf review's top change that applies here: small slices skip the custom
    # call; XLA fuses the prefix slice into the consumer for free.
    if not force_kernel and num_chunks is None and copy_bytes < _SMALL_COPY_BYTES:
        return jax.lax.slice(E, (0, 0), (T, embed_size))

    n_chunks = _pick_num_chunks(copy_bytes, T) if num_chunks is None else int(num_chunks)
    chunks = _chunk_rows(T, n_chunks)

    out = pl.pallas_call(
        functools.partial(_pos_embed_dma_kernel, chunks),
        out_shape=jax.ShapeDtypeStruct((T, embed_size), E.dtype),
        # Leave both operands in HBM; the kernel issues the copies itself.
        in_specs=[pl.BlockSpec(memory_space=pl.ANY)],
        out_specs=pl.BlockSpec(memory_space=pl.ANY),
        scratch_shapes=[pltpu.SemaphoreType.DMA((len(chunks),))],
        # Pure mem-bound copy: read + write of T * embed_size elements.
        cost_estimate=pl.CostEstimate(
            flops=0,
            transcendentals=0,
            bytes_accessed=2 * copy_bytes,
        ),
    )(E)
    return out


if __name__ == "__main__":
    # Deterministic parameter init matching the module's __init__:
    #   E = randn(n_timesteps, embed_size) / sqrt(n_timesteps)
    n_timesteps = 16
    embed_size = 128          # lane-aligned
    B, T = 2, 8

    key = jax.random.PRNGKey(0)
    k_e, k_x = jax.random.split(key)
    E = (jax.random.normal(k_e, (n_timesteps, embed_size), dtype=jnp.float32)
         / jnp.sqrt(jnp.float32(n_timesteps)))
    # Token-index input (values unused by the forward, only shape matters).
    x = jax.random.randint(k_x, (B, T), 0, n_timesteps, dtype=jnp.int32)
    ref = E[:T]

    # 1) Pallas single-DMA path (forced: at this tiny size the wrapper would
    #    otherwise take the plain-slice fast path).
    out = jax.block_until_ready(positional_embedding_forward(x, E, force_kernel=True))
    assert out.shape == (T, embed_size)
    assert out.dtype == jnp.float32
    assert bool(jnp.allclose(out, ref))

    # 2) Chunked multi-descriptor DMA path, exercised at small scale
    #    (T=16 split into two sublane-aligned 8-row chunks).
    x_full = jax.random.randint(k_x, (B, n_timesteps), 0, n_timesteps, dtype=jnp.int32)
    out2 = jax.block_until_ready(
        positional_embedding_forward(x_full, E, force_kernel=True, num_chunks=2))
    assert out2.shape == (n_timesteps, embed_size)
    assert bool(jnp.allclose(out2, E[:n_timesteps]))

    # 3) Small-slice fast path (no custom call — plain XLA slice).
    out3 = jax.block_until_ready(positional_embedding_forward(x, E))
    assert bool(jnp.allclose(out3, ref))

    print("KERNEL_OK")
</pallas_src>

<mosaic_0001>
module attributes {stable_mosaic.version = 11 : i64} {
  func.func @_pos_embed_dma_kernel(%arg0: memref<16x128xf32, #tpu.memory_space<any>>, %arg1: memref<8x128xf32, #tpu.memory_space<any>>, %arg2: memref<1x!tpu.dma_semaphore, #tpu.memory_space<semaphore_mem>>) attributes {dimension_semantics = [], scalar_prefetch = 0 : i64, scratch_operands = 1 : i64, tpu.core_type = #tpu.core_type<tc>} {
    %c0_i32 = arith.constant 0 : i32
    %c0_i32_0 = arith.constant 0 : i32
    %c0_i32_1 = arith.constant 0 : i32
    %0 = tpu.memref_slice %arg0[%c0_i32_0, %c0_i32_1] : memref<16x128xf32, #tpu.memory_space<any>> -> memref<8x128xf32, #tpu.memory_space<any>>
    %c0_i32_2 = arith.constant 0 : i32
    %c0_i32_3 = arith.constant 0 : i32
    %1 = tpu.memref_slice %arg1[%c0_i32_2, %c0_i32_3] : memref<8x128xf32, #tpu.memory_space<any>> -> memref<8x128xf32, #tpu.memory_space<any>>
    %2 = tpu.memref_slice %arg2[%c0_i32] : memref<1x!tpu.dma_semaphore, #tpu.memory_space<semaphore_mem>> -> memref<1x!tpu.dma_semaphore, #tpu.memory_space<semaphore_mem>>
    %3 = tpu.memref_squeeze %2 : memref<1x!tpu.dma_semaphore, #tpu.memory_space<semaphore_mem>> -> memref<!tpu.dma_semaphore, #tpu.memory_space<semaphore_mem>>
    tpu.enqueue_dma source(%0 : memref<8x128xf32, #tpu.memory_space<any>>) target(%1 : memref<8x128xf32, #tpu.memory_space<any>>) target_semaphore(%3 : memref<!tpu.dma_semaphore, #tpu.memory_space<semaphore_mem>>)
    %c0_i32_4 = arith.constant 0 : i32
    %c0_i32_5 = arith.constant 0 : i32
    %c0_i32_6 = arith.constant 0 : i32
    %4 = tpu.memref_slice %arg0[%c0_i32_5, %c0_i32_6] : memref<16x128xf32, #tpu.memory_space<any>> -> memref<8x128xf32, #tpu.memory_space<any>>
    %c0_i32_7 = arith.constant 0 : i32
    %c0_i32_8 = arith.constant 0 : i32
    %5 = tpu.memref_slice %arg1[%c0_i32_7, %c0_i32_8] : memref<8x128xf32, #tpu.memory_space<any>> -> memref<8x128xf32, #tpu.memory_space<any>>
    %6 = tpu.memref_slice %arg2[%c0_i32_4] : memref<1x!tpu.dma_semaphore, #tpu.memory_space<semaphore_mem>> -> memref<1x!tpu.dma_semaphore, #tpu.memory_space<semaphore_mem>>
    %7 = tpu.memref_squeeze %6 : memref<1x!tpu.dma_semaphore, #tpu.memory_space<semaphore_mem>> -> memref<!tpu.dma_semaphore, #tpu.memory_space<semaphore_mem>>
    tpu.wait_dma2 semaphore(%7 : memref<!tpu.dma_semaphore, #tpu.memory_space<semaphore_mem>>) src(%4 : memref<8x128xf32, #tpu.memory_space<any>>) dst(%5 : memref<8x128xf32, #tpu.memory_space<any>>)
    return
  }
}

</mosaic_0001>

<llo_original>
// kernel: tpu_custom_call.1
$region0: #{tpu_custom_call.1}
  #allocation0 [shape = 'u32[]', space=smem, size = 0x4, offset = 0x4, fixed_abs, tag = 'smem constant byte address 0x4 - core index']
  #allocation1 [shape = 'u32[144,128]{1,0:T(1,128)}', space=vmem, size = 0x12000, scoped, tag = 'internal scratch']
  #allocation2 [shape = 's32[1]{0}', space=sflag, size = 0x4, scoped, tag = 'scratch operand']
  #allocation3 [shape = 's32[]', space=sflag, size = 0x4, offset = 0, fixed_abs, tag = 'sflag constant byte address 0x0 - dummy sync flag']
  #allocation4 [shape = 'u32[0]{0}', space=smem, size = 0, offset = 0, fixed_abs, tag = 'smem constant byte address 0x0 - null']
  %s0 = inlined_call_operand.hbm [shape: f32[16,128], index: 0, kind: input, shape index: {}]
  %s1 = inlined_call_operand.hbm [shape: f32[8,128], index: 1, kind: output, shape index: {}]
  %s2 = sld [smem:[#allocation0]]
  $region2: #{tpu_custom_call.1} parent=0
    _
  %s4 = ssub.s32 1, %s2
  %s5 = scalar_select 0, %s4, %s2
  %s7 = sshll.u32 1, 14
  %s8 = sxor.u32 4294967295, %s7
  %s11 = sshll.u32 3, 24
  %s12 = sxor.u32 4294967295, %s11
  %s13 = sand.u32 0, %s12
  %s15 = sor.u32 %s13, 0
  %18 = dma.general %s0, 128, %s1, [#allocation2], [#allocation3], [#allocation4], %s15, 0
  %s19 = smul.u32 8, 1
  %s20 = sshll.u32 %s19, 4
  %21 = dma.done [#allocation2], %s20
  %22 = vsyncmov [#allocation2]
  %s23 = vpop.sfrf %22
  %p24 = scmp.eq.s32.totalorder %s23, 0
  %p25 = pneg %p24
  %27 = shalt.err (%p25)

</llo_original>
